<compile_context>
chip_gen: v7x
topology: tpu7x:2x2x1
jax: 0.10.0
libtpu: 0.0.40
codegen_flags: <defaults>
</compile_context>

<pallas_src>
import functools

import jax
import jax.numpy as jnp
from jax.experimental import pallas as pl
from jax.experimental.pallas import tpu as pltpu


def _mlt_loss_kernel(x_ref, t_ref, out_ref, *, n_rows):
    """One row-tile of soft-target cross-entropy.

    x_ref, t_ref : VMEM refs of shape (TM, C), native dtype (upcast here)
    out_ref      : VMEM ref of shape (1, 8, 128); the tile's partial sum of
                   per-row losses, broadcast across the lane-dense slab.
    """
    x = x_ref[...].astype(jnp.float32)
    t = t_ref[...].astype(jnp.float32)

    # TODO(synk): logpt = sigmoid(x) is dead code in the reference forward
    # (its result is never used), so it is intentionally not materialized.

    # Numerically-stable log-softmax over the class (last / lane) axis.
    m = jnp.max(x, axis=-1, keepdims=True)
    shifted = x - m
    lse = jnp.log(jnp.sum(jnp.exp(shifted), axis=-1, keepdims=True))
    log_probs = shifted - lse                                   # (TM, C)

    per_row = -jnp.sum(t * log_probs, axis=-1, keepdims=True)   # (TM, 1)

    # Mask rows of the (possibly ragged) last tile that fall past the true N.
    tm = x_ref.shape[0]
    row0 = pl.program_id(0) * tm
    row_ids = row0 + jax.lax.broadcasted_iota(jnp.int32, (tm, 1), 0)
    valid = row_ids < n_rows
    partial = jnp.sum(jnp.where(valid, per_row, 0.0))           # f32 scalar

    out_ref[...] = jnp.full(out_ref.shape, partial, jnp.float32)


def _vmem_limit_and_buffer_budget():
    """(scoped VMEM limit, budget for the 2 inputs x 2 pipeline buffers), per gen."""
    kind = ""
    try:
        kind = jax.devices()[0].device_kind.lower()
    except Exception:  # pragma: no cover - CPU/interpret fallback
        pass
    if "v7" in kind:
        # v7x: 64 MiB physical VMEM -> stay well inside it.
        return 40 * 1024 * 1024, 16 * 1024 * 1024
    # v5e / v6e: 128 MiB physical VMEM; raise the (16/32 MiB) scoped default.
    return 96 * 1024 * 1024, 48 * 1024 * 1024


def _choose_tile_rows(n, c, itemsize, buffer_budget):
    """Largest row tile whose double-buffered inputs fit the VMEM budget."""
    per_row = 2 * 2 * c * itemsize          # 2 inputs x 2 pipeline buffers
    tm = int(buffer_budget // max(per_row, 1))
    tm = min(tm, 1024)                      # diminishing returns past ~1k rows
    if tm >= n:
        return n                            # single full-extent block
    tm = max((tm // 8) * 8, 8)              # sublane alignment for partial tiles
    return tm


def mlt_loss(v2g_sim_matrix, l2g_sim_matrix, *, tile_rows=None):
    """Pallas MLT loss. Inputs: (N, C) arrays (native dtype). Returns scalar f32."""
    assert v2g_sim_matrix.shape == l2g_sim_matrix.shape
    assert v2g_sim_matrix.ndim == 2
    n, c = v2g_sim_matrix.shape
    itemsize = jnp.dtype(v2g_sim_matrix.dtype).itemsize

    vmem_limit, buf_budget = _vmem_limit_and_buffer_budget()
    tm = tile_rows if tile_rows is not None else _choose_tile_rows(
        n, c, itemsize, buf_budget)
    if tm < n:
        assert tm % 8 == 0, "row tile must be sublane (8) aligned when tiling"
    num_tiles = pl.cdiv(n, tm)

    kernel = functools.partial(_mlt_loss_kernel, n_rows=n)

    cost = pl.CostEstimate(
        flops=6 * n * c,
        transcendentals=n * c,
        bytes_accessed=2 * n * c * itemsize + num_tiles * 8 * 128 * 4,
    )

    partials = pl.pallas_call(
        kernel,
        out_shape=jax.ShapeDtypeStruct((num_tiles, 8, 128), jnp.float32),
        grid=(num_tiles,),
        in_specs=[
            # Full-C rows: C is the softmax reduction axis, keep it untiled.
            pl.BlockSpec((tm, c), lambda i: (i, 0)),
            pl.BlockSpec((tm, c), lambda i: (i, 0)),
        ],
        # Lane-dense per-tile partial-sum slab; row axis can be 'parallel'.
        out_specs=pl.BlockSpec((1, 8, 128), lambda i: (i, 0, 0)),
        compiler_params=pltpu.CompilerParams(
            dimension_semantics=("parallel",),
            vmem_limit_bytes=vmem_limit,
        ),
        cost_estimate=cost,
    )(v2g_sim_matrix, l2g_sim_matrix)

    # Final mean over the true row count (reduction='mean').
    return jnp.sum(partials[:, 0, 0]) * (1.0 / n)


def _reference(x, t):
    """Pure-JAX reference mirroring F.cross_entropy(input, soft_target)."""
    logp = jax.nn.log_softmax(x.astype(jnp.float32), axis=-1)
    return jnp.mean(-jnp.sum(t.astype(jnp.float32) * logp, axis=-1))


if __name__ == "__main__":
    key = jax.random.PRNGKey(0)
    k1, k2, k3, k4 = jax.random.split(key, 4)

    # MLT-style (N, N) similarity matrices (N = batch size). Small shapes.
    N, C = 8, 8
    v2g = jax.random.normal(k1, (N, C), dtype=jnp.float32)
    l2g = jax.random.normal(k2, (N, C), dtype=jnp.float32)

    loss = jax.block_until_ready(mlt_loss(v2g, l2g))
    ref = _reference(v2g, l2g)
    assert jnp.allclose(loss, ref, rtol=1e-5, atol=1e-5), (loss, ref)

    # Second check: force row tiling with a ragged last tile to exercise the
    # masking / per-tile partial-sum path (N=40 rows, TM=16 -> tiles 16,16,8).
    N2, C2 = 40, 24
    v2g2 = jax.random.normal(k3, (N2, C2), dtype=jnp.float32)
    l2g2 = jax.random.normal(k4, (N2, C2), dtype=jnp.float32)

    loss2 = jax.block_until_ready(mlt_loss(v2g2, l2g2, tile_rows=16))
    ref2 = _reference(v2g2, l2g2)
    assert jnp.allclose(loss2, ref2, rtol=1e-5, atol=1e-5), (loss2, ref2)

    print("KERNEL_OK")
</pallas_src>

<mosaic_0001>
module attributes {stable_mosaic.version = 11 : i64} {
  func.func @_mlt_loss_kernel(%arg0: i32, %arg1: memref<8x8xf32, #tpu.memory_space<vmem>>, %arg2: memref<8x8xf32, #tpu.memory_space<vmem>>, %arg3: memref<1x8x128xf32, #tpu.memory_space<vmem>>) attributes {dimension_semantics = [#tpu.dimension_semantics<parallel>], iteration_bounds = array<i64: 1>, scalar_prefetch = 0 : i64, scratch_operands = 0 : i64, tpu.core_type = #tpu.core_type<tc>, window_params = [{transform_indices = @transform_0, window_bounds = array<i64: 8, 8>}, {transform_indices = @transform_1, window_bounds = array<i64: 8, 8>}, {transform_indices = @transform_2, window_bounds = array<i64: 1, 8, 128>}]} {
    %c0 = arith.constant 0 : index
    %c0_0 = arith.constant 0 : index
    %0 = vector.load %arg1[%c0, %c0_0] : memref<8x8xf32, #tpu.memory_space<vmem>>, vector<8x8xf32>
    %c0_1 = arith.constant 0 : index
    %c0_2 = arith.constant 0 : index
    %1 = vector.load %arg2[%c0_1, %c0_2] : memref<8x8xf32, #tpu.memory_space<vmem>>, vector<8x8xf32>
    %cst = arith.constant dense<0xFF800000> : vector<8xf32>
    %2 = vector.multi_reduction <maximumf>, %0, %cst [1] : vector<8x8xf32> to vector<8xf32>
    %3 = vector.shape_cast %2 : vector<8xf32> to vector<8x1xf32>
    %4 = vector.broadcast %3 : vector<8x1xf32> to vector<8x8xf32>
    %5 = arith.subf %0, %4 : vector<8x8xf32>
    %6 = math.exp %5 : vector<8x8xf32>
    %cst_3 = arith.constant dense<0.000000e+00> : vector<8xf32>
    %7 = vector.multi_reduction <add>, %6, %cst_3 [1] : vector<8x8xf32> to vector<8xf32>
    %8 = vector.shape_cast %7 : vector<8xf32> to vector<8x1xf32>
    %9 = math.log %8 : vector<8x1xf32>
    %10 = vector.broadcast %9 : vector<8x1xf32> to vector<8x8xf32>
    %11 = arith.subf %5, %10 : vector<8x8xf32>
    %12 = arith.mulf %1, %11 : vector<8x8xf32>
    %cst_4 = arith.constant dense<0.000000e+00> : vector<8xf32>
    %13 = vector.multi_reduction <add>, %12, %cst_4 [1] : vector<8x8xf32> to vector<8xf32>
    %14 = vector.shape_cast %13 : vector<8xf32> to vector<8x1xf32>
    %cst_5 = arith.constant 0.000000e+00 : f32
    %15 = vector.broadcast %cst_5 : f32 to vector<8x1xf32>
    %16 = arith.subf %15, %14 : vector<8x1xf32>
    %c8_i32 = arith.constant 8 : i32
    %17 = arith.muli %arg0, %c8_i32 : i32
    %18 = tpu.iota {dimensions = array<i32: 0>} : vector<8x1xi32>
    %19 = vector.broadcast %17 : i32 to vector<8x1xi32>
    %20 = arith.addi %19, %18 : vector<8x1xi32>
    %c8_i32_6 = arith.constant 8 : i32
    %21 = vector.broadcast %c8_i32_6 : i32 to vector<8x1xi32>
    %22 = arith.cmpi slt, %20, %21 : vector<8x1xi32>
    %cst_7 = arith.constant 0.000000e+00 : f32
    %23 = vector.broadcast %cst_7 : f32 to vector<8x1xf32>
    %24 = arith.select %22, %16, %23 : vector<8x1xi1>, vector<8x1xf32>
    %25 = vector.shape_cast %24 : vector<8x1xf32> to vector<1x8x1xf32>
    %cst_8 = arith.constant dense<0.000000e+00> : vector<1xf32>
    %26 = vector.multi_reduction <add>, %25, %cst_8 [1, 2] : vector<1x8x1xf32> to vector<1xf32>
    %27 = vector.shape_cast %26 : vector<1xf32> to vector<1x1x1xf32>
    %28 = vector.extract %27[0, 0, 0] : f32 from vector<1x1x1xf32>
    %29 = vector.broadcast %28 : f32 to vector<1x8x128xf32>
    %c0_9 = arith.constant 0 : index
    %c0_10 = arith.constant 0 : index
    %c0_11 = arith.constant 0 : index
    %30 = vector.load %arg3[%c0_9, %c0_10, %c0_11] : memref<1x8x128xf32, #tpu.memory_space<vmem>>, vector<1x8x128xf32>
    tpu.vector_store %arg3[%c0_9, %c0_10, %c0_11], %29 {strides = array<i32>} : memref<1x8x128xf32, #tpu.memory_space<vmem>>, vector<1x8x128xf32>,
    return
  }
  func.func @transform_0(%arg0: i32) -> (i32, i32) {
    %c0_i32 = arith.constant 0 : i32
    %c0_i32_0 = arith.constant 0 : i32
    return %arg0, %c0_i32 : i32, i32
  }
  func.func @transform_1(%arg0: i32) -> (i32, i32) {
    %c0_i32 = arith.constant 0 : i32
    %c0_i32_0 = arith.constant 0 : i32
    return %arg0, %c0_i32 : i32, i32
  }
  func.func @transform_2(%arg0: i32) -> (i32, i32, i32) {
    %c0_i32 = arith.constant 0 : i32
    %c0_i32_0 = arith.constant 0 : i32
    %c0_i32_1 = arith.constant 0 : i32
    return %arg0, %c0_i32, %c0_i32_0 : i32, i32, i32
  }
}

</mosaic_0001>

<llo_original>
// kernel: tpu_custom_call.1
$region0: #{tpu_custom_call.1}
  #allocation0 [shape = 'u32[]', space=smem, size = 0x4, offset = 0x4, fixed_abs, tag = 'smem constant byte address 0x4 - core index']
  #allocation1 [shape = 'u32[144,128]{1,0:T(1,128)}', space=vmem, size = 0x12000, scoped, tag = 'internal scratch']
  %s0 = inlined_call_operand.hbm [shape: f32[8,8], index: 0, kind: input, shape index: {}]
  %s1 = inlined_call_operand.hbm [shape: f32[8,8], index: 1, kind: input, shape index: {}]
  %s2 = inlined_call_operand.hbm [shape: f32[1,8,128], index: 2, kind: output, shape index: {}]
  %s3 = sld [smem:[#allocation0]]
  $region26: #{tpu_custom_call.1} parent=0
    _
  %s5 = ssub.s32 1, %s3
  %s6 = scalar_select 0, %s5, %s3
  $region1: #{tpu_custom_call.1} parent=0
    #allocation2 [shape = 'u8[4096]{0}', space=vmem, size = 0x1000, scoped, tag = 'input window, operand 0, single buffered']
    #allocation3 [shape = 's32[1]{0}', space=sflag, size = 0x4, scoped, tag = 'scoped memory for tpu_custom_call.1']
    #allocation4 [shape = 's32[1]{0}', space=sflag, size = 0x4, scoped, tag = 'scoped memory for tpu_custom_call.1']
    #allocation5 [shape = 'u8[4096]{0}', space=vmem, size = 0x1000, scoped, tag = 'input window, operand 1, single buffered']
    #allocation6 [shape = 's32[1]{0}', space=sflag, size = 0x4, scoped, tag = 'scoped memory for tpu_custom_call.1']
    #allocation7 [shape = 'u8[4096]{0}', space=vmem, size = 0x1000, scoped, tag = 'output window, operand 0, single buffered']
    %7 = vsyncpa [#allocation3], 0
    %8 = vsyncpa [#allocation6], 0
    %9 = vsyncpa [#allocation4], 0
    // Predicated region
    $region2: #{tpu_custom_call.1} parent=1 // pred_check
      _
    $region3: #{tpu_custom_call.1} parent=1 // pred_check_branch
      %11 = sbr.rel (0) target = $region5
    $region4: #{tpu_custom_call.1} parent=1 // pred_region
      %s13 = ssub.s32 128, 128
      %14 = vsyncadd [#allocation3], %s13
      %s16 = sshll.u32 [#allocation2], 4
      %s17 = int_to_ptr.vmem [resolvable:$true] %s16
      %19 = dma.hbm_to_vmem [thread:$0]  %s0, 128, %s17, [#allocation3]
    $region5: #{tpu_custom_call.1} parent=1 // pred_fallthru
      _
    // Predicated region
    $region6: #{tpu_custom_call.1} parent=1 // pred_check
      _
    $region7: #{tpu_custom_call.1} parent=1 // pred_check_branch
      %21 = sbr.rel (0) target = $region9
    $region8: #{tpu_custom_call.1} parent=1 // pred_region
      %s23 = ssub.s32 128, 128
      %24 = vsyncadd [#allocation6], %s23
      %s26 = sshll.u32 [#allocation5], 4
      %s27 = int_to_ptr.vmem [resolvable:$true] %s26
      %29 = dma.hbm_to_vmem [thread:$0]  %s1, 128, %s27, [#allocation6]
    $region9: #{tpu_custom_call.1} parent=1 // pred_fallthru
      _
    // Predicated region
    $region10: #{tpu_custom_call.1} parent=1 // pred_check
      _
    $region11: #{tpu_custom_call.1} parent=1 // pred_check_branch
      %31 = sbr.rel (0) target = $region13
    $region12: #{tpu_custom_call.1} parent=1 // pred_region
      %32 = dma.done [#allocation3], 128
    $region13: #{tpu_custom_call.1} parent=1 // pred_fallthru
      _
    // Predicated region
    $region14: #{tpu_custom_call.1} parent=1 // pred_check
      _
    $region15: #{tpu_custom_call.1} parent=1 // pred_check_branch
      %34 = sbr.rel (0) target = $region17
    $region16: #{tpu_custom_call.1} parent=1 // pred_region
      %35 = dma.done [#allocation6], 128
    $region17: #{tpu_custom_call.1} parent=1 // pred_fallthru
      _
    %v36 = vld [vmem:[#allocation2] sm:$0xff]
    %v37 = vld [vmem:[#allocation5] sm:$0xff]
    %vm38 = vcmask 64512
    %v39 = vsel %vm38, %v36, -inf
    %40 = vmax.xlane.f32.xlu0 %v39
    %v41 = vpop.xlane.xlu0 %40
    %v42 = vsub.f32 %v36, %v41
    %v43 = vmul.f32 %v42, 1.442695
    %v44 = vpow.pop %v43
    %v45 = vsel %vm38, %v44, 0.0
    %46 = vadd.xlane.f32.xlu0 %v45
    %v47 = vpop.xlane.xlu0 %46
    %v48 = vlog2.pop %v47
    %v49 = vmul.f32 %v48, 0.6931472
    %v50 = vsub.f32 %v42, %v49
    %v51 = vmul.f32 %v37, %v50
    %v52 = vsel %vm38, %v51, 0.0
    %53 = vadd.xlane.f32.xlu0 %v52
    %v54 = vpop.xlane.xlu0 %53
    %v55 = vsub.f32 0.0, %v54
    %s56 = smul.u32 0, 8
    %v57 = vlaneseq
    %v58 = vshrl.u32 %v57, 7
    %v59 = vstv %s56
    %v60 = vadd.s32 %v59, %v58
    %vm61 = vcmp.lt.s32.totalorder %v60, 8
    %v62 = vsel %vm61, %v55, 0.0
    %vm63 = vcmask 7168
    %v64 = vsel %vm63, %v62, 0.0
    %65 = vadd.xlane.f32.xlu0 %v64
    %v66 = vpop.xlane.xlu0 %65
    %v67 = vrot.slane %v66, 4
    %v68 = vadd.f32 %v66, %v67
    %v69 = vrot.slane %v68, 2
    %v70 = vadd.f32 %v68, %v69
    %v71 = vrot.slane %v70, 1
    %v72 = vadd.f32 %v70, %v71
    %s73 = vtos %v72
    %v74 = vstv %s73
    %75 = vst [vmem:[#allocation7] sm:$0xff] %v74
    // Predicated region
    $region18: #{tpu_custom_call.1} parent=1 // pred_check
      _
    $region19: #{tpu_custom_call.1} parent=1 // pred_check_branch
      %77 = sbr.rel (0) target = $region21
    $region20: #{tpu_custom_call.1} parent=1 // pred_region
      %s79 = ssub.s32 128, 128
      %80 = vsyncadd [#allocation4], %s79
      %s82 = sshll.u32 [#allocation7], 4
      %s83 = int_to_ptr.vmem [resolvable:$true] %s82
      %85 = dma.vmem_to_hbm [thread:$0]  %s83, 128, %s2, [#allocation4]
    $region21: #{tpu_custom_call.1} parent=1 // pred_fallthru
      _
    // Predicated region
    $region22: #{tpu_custom_call.1} parent=1 // pred_check
      _
    $region23: #{tpu_custom_call.1} parent=1 // pred_check_branch
      %87 = sbr.rel (0) target = $region25
    $region24: #{tpu_custom_call.1} parent=1 // pred_region
      %88 = dma.done [#allocation4], 128
    $region25: #{tpu_custom_call.1} parent=1 // pred_fallthru
      _
    %89 = vsyncpa [#allocation3], 1
    %90 = vsyncpa [#allocation6], 1
    %91 = vsyncpa [#allocation4], 1

</llo_original>
